<compile_context>
chip_gen: v7x
topology: tpu7x:2x2x1
jax: 0.10.0
libtpu: 0.0.40
codegen_flags: <defaults>
</compile_context>

<pallas_src>
import functools

import jax
import jax.numpy as jnp
from jax.experimental import pallas as pl
from jax.experimental.pallas import tpu as pltpu


def _biaffine_kernel(*refs, bias_x, bias_y, flat_m):
    # ref order: x, W_main, [W bias_x row], [W bias_y col], [corner], y, out
    it = iter(refs)
    x_ref = next(it)                                       # (Bb, tx, n_in)
    wm_ref = next(it)                                      # (1, n_in, n_in)
    wb_ref = next(it) if bias_x else None                  # (1, 1, n_in)
    wc_ref = next(it) if bias_y else None                  # (1, n_in, 1)
    cr_ref = next(it) if (bias_x and bias_y) else None     # (1, 1, 1)
    y_ref = next(it)                                       # (Bb, ty, n_in)
    o_ref = next(it)                                       # (Bb, 1, tx, ty)

    Bb, tx, n_in = x_ref.shape
    x = x_ref[...]
    wm = wm_ref[0]                                         # (n_in, n_in)

    if flat_m:
        # Merge (Bb, tx) -> M: one MXU pass instead of Bb small ones.
        xm = x.reshape(Bb * tx, n_in)
        xw = jax.lax.dot_general(
            xm, wm, dimension_numbers=(((1,), (0,)), ((), ())),
            preferred_element_type=jnp.float32)            # (Bb*tx, n_in)
        if bias_x:
            xw = xw + wb_ref[0]                            # + W[n_in, :n_in] row
        xw3 = xw.reshape(Bb, tx, n_in)
    else:
        xw3 = jax.lax.dot_general(
            x, wm, dimension_numbers=(((2,), (0,)), ((), ())),
            preferred_element_type=jnp.float32)            # (Bb, tx, n_in)
        if bias_x:
            xw3 = xw3 + wb_ref[0]

    y = y_ref[...]
    if y.dtype != xw3.dtype:
        y = y.astype(xw3.dtype)
    # s[b, q, t] = sum_i xw3[b, q, i] * y[b, t, i]  (transposed-RHS contraction,
    # no explicit y transpose; Mosaic feeds the MXU directly).
    s = jax.lax.dot_general(
        xw3, y, dimension_numbers=(((2,), (2,)), ((0,), (0,))),
        preferred_element_type=jnp.float32)                # (Bb, tx, ty)

    if bias_y:
        # Ones-column of y: + x @ W[:n_in, n_in], broadcast along ty, plus the
        # W[n_in, n_in] corner when bias_x is also set.
        col3 = jax.lax.dot_general(
            x, wc_ref[0], dimension_numbers=(((2,), (0,)), ((), ())),
            preferred_element_type=jnp.float32)            # (Bb, tx, 1)
        if bias_x:
            col3 = col3 + cr_ref[0]                        # (1, 1) broadcast
        s = s + col3

    o_ref[:, 0, :, :] = s.astype(o_ref.dtype)


@functools.partial(jax.jit, static_argnames=("bias_x", "bias_y"))
def biaffine_forward(x, y, weight, bias_x=True, bias_y=True):
    """Pallas implementation of Biaffine.forward.

    x: (B, Sx, n_in), y: (B, Sy, n_in)
    weight: (n_out, n_in + bias_x, n_in + bias_y)
    returns: (B, Sx, Sy) if n_out == 1 else (B, n_out, Sx, Sy)
    """
    B, Sx, n_in = x.shape
    By, Sy, n_in_y = y.shape
    n_out = weight.shape[0]
    Dx = n_in + (1 if bias_x else 0)
    Dy = n_in_y + (1 if bias_y else 0)
    assert B == By and n_in == n_in_y
    assert weight.shape == (n_out, Dx, Dy)

    # Tiny one-time weight split so the kernel never slices along the lane axis.
    wm = weight[:, :n_in, :n_in]                                       # (n_out, n_in, n_in)
    wb = weight[:, n_in:n_in + 1, :n_in] if bias_x else None           # (n_out, 1, n_in)
    wc = weight[:, :n_in, n_in:n_in + 1] if bias_y else None           # (n_out, n_in, 1)
    cr = (weight[:, n_in:n_in + 1, n_in:n_in + 1]
          if (bias_x and bias_y) else None)                            # (n_out, 1, 1)

    # ---- Lane-dense output: pad Sy so stores are full-lane vst -----------------
    LANE = 128
    if Sy % LANE == 0:
        Sy_p = Sy
    elif Sy < LANE:
        Sy_p = LANE
    else:
        up128 = pl.cdiv(Sy, LANE) * LANE
        # Accept <=12.5% extra columns for lane-dense stores + Sy tiling;
        # otherwise only round to the sublane multiple of 8.
        Sy_p = up128 if (up128 - Sy) * 8 <= Sy else pl.cdiv(Sy, 8) * 8
    y_in = y if Sy_p == Sy else jnp.pad(y, ((0, 0), (0, Sy_p - Sy), (0, 0)))

    # ---- Real VMEM budget ------------------------------------------------------
    in_item = x.dtype.itemsize
    w_item = weight.dtype.itemsize
    out_item = in_item
    w_elems = (n_in * n_in
               + (n_in if bias_x else 0)
               + (n_in if bias_y else 0)
               + (1 if (bias_x and bias_y) else 0))

    def step_bytes(Bb_, tx_, ty_):
        # x2: Pallas double-buffers every streamed block; plus f32 in-kernel temps.
        blocks = 2 * (Bb_ * tx_ * n_in * in_item          # x tile
                      + Bb_ * ty_ * n_in * in_item        # y tile
                      + Bb_ * tx_ * ty_ * out_item        # output tile
                      + w_elems * w_item)                 # weight blocks
        temps = 4 * (Bb_ * tx_ * n_in                     # xw (f32)
                     + Bb_ * tx_ * ty_                    # s  (f32)
                     + Bb_ * tx_)                         # bias_y column (f32)
        return blocks + temps

    try:
        vmem_cap = int(pltpu.get_tpu_info().vmem_capacity_bytes)
    except Exception:
        vmem_cap = 0
    if vmem_cap <= 0:
        vmem_cap = 64 << 20          # conservative fallback: v7x per-TC VMEM
    budget = int(vmem_cap * 0.45)    # headroom for compiler scratch / spills

    # ---- Tile selection --------------------------------------------------------
    tx = min(Sx, 512) if Sx % 8 == 0 else Sx
    # TODO(synk): also pad Sx to a multiple of 8 (and slice) so a huge ragged Sx
    # does not force a single full-Sx tile.
    ty = Sy_p

    def fits(Bb_, tx_, ty_):
        return step_bytes(Bb_, tx_, ty_) <= budget

    # Shrink ty (multiples of 128) then tx (multiples of 8) until a Bb=1 step fits.
    while not fits(1, tx, ty):
        if Sy_p % 128 == 0 and ty > 128:
            ty = max(128, (ty // 2) // 128 * 128)
        elif Sx % 8 == 0 and tx > 8:
            tx = max(8, (tx // 2) // 8 * 8)
        else:
            break

    # Grow the batch block to amortize per-grid-step overhead.
    Bb = 1
    while Bb < B and fits(Bb + 1, tx, ty):
        Bb += 1

    # Keep at least 2 grid steps so both v7x TensorCores get work.
    def n_steps(Bb_, tx_, ty_):
        return pl.cdiv(B, Bb_) * pl.cdiv(Sx, tx_) * pl.cdiv(Sy_p, ty_) * n_out

    if n_steps(Bb, tx, ty) < 2:
        if B >= 2:
            Bb = pl.cdiv(B, 2)
        elif Sx % 8 == 0 and Sx >= 16:
            tx = max(8, (Sx // 2) // 8 * 8)
        elif Sy_p % 128 == 0 and Sy_p >= 256:
            ty = max(128, (Sy_p // 2) // 128 * 128)
        # else: nothing worth splitting; a single step is fine on 1-TC chips.

    nb, nsx, nsy = pl.cdiv(B, Bb), pl.cdiv(Sx, tx), pl.cdiv(Sy_p, ty)
    flat_m = (tx % 8 == 0) or (Bb == 1)

    # Grid: n_out fastest (only the tiny weight block changes per o), then Sy
    # tiles (y re-fetched), then Sx tiles (x re-fetched), batch slowest.
    grid = (nb, nsx, nsy, n_out)

    in_specs = [
        pl.BlockSpec((Bb, tx, n_in), lambda b, i, j, o: (b, i, 0)),     # x
        pl.BlockSpec((1, n_in, n_in), lambda b, i, j, o: (o, 0, 0)),    # W main
    ]
    args = [x, wm]
    if bias_x:
        in_specs.append(pl.BlockSpec((1, 1, n_in), lambda b, i, j, o: (o, 0, 0)))
        args.append(wb)
    if bias_y:
        in_specs.append(pl.BlockSpec((1, n_in, 1), lambda b, i, j, o: (o, 0, 0)))
        args.append(wc)
    if bias_x and bias_y:
        in_specs.append(pl.BlockSpec((1, 1, 1), lambda b, i, j, o: (o, 0, 0)))
        args.append(cr)
    in_specs.append(pl.BlockSpec((Bb, ty, n_in), lambda b, i, j, o: (b, j, 0)))  # y
    args.append(y_in)

    out_specs = pl.BlockSpec((Bb, 1, tx, ty), lambda b, i, j, o: (b, o, i, j))

    vmem_limit = int(min(int(vmem_cap * 0.9),
                         max(2 * step_bytes(Bb, tx, ty), 32 << 20)))

    flops = (2 * B * n_out * Sx * n_in * n_in
             + 2 * B * n_out * Sx * Sy_p * n_in
             + (2 * B * n_out * Sx * n_in if bias_y else 0))
    bytes_accessed = (x.size * in_item
                      + y_in.size * in_item * nsx         # y re-streamed per Sx tile
                      + weight.size * w_item
                      + B * n_out * Sx * Sy_p * out_item)

    kernel = functools.partial(_biaffine_kernel, bias_x=bias_x, bias_y=bias_y,
                               flat_m=flat_m)

    out = pl.pallas_call(
        kernel,
        out_shape=jax.ShapeDtypeStruct((B, n_out, Sx, Sy_p), x.dtype),
        grid_spec=pltpu.PrefetchScalarGridSpec(
            num_scalar_prefetch=0,
            grid=grid,
            in_specs=in_specs,
            out_specs=out_specs,
        ),
        compiler_params=pltpu.CompilerParams(
            dimension_semantics=("parallel", "parallel", "parallel", "parallel"),
            vmem_limit_bytes=vmem_limit,
        ),
        cost_estimate=pl.CostEstimate(
            flops=flops, transcendentals=0, bytes_accessed=bytes_accessed),
    )(*args)

    if Sy_p != Sy:
        out = out[..., :Sy]
    if n_out == 1:
        out = jnp.squeeze(out, axis=1)   # matches s.squeeze(1)
    return out


def _reference(x, y, weight, bias_x=True, bias_y=True):
    # Pure-JAX reference (mirrors the torch.einsum exactly).
    if bias_x:
        x = jnp.concatenate([x, jnp.ones_like(x[..., :1])], axis=-1)
    if bias_y:
        y = jnp.concatenate([y, jnp.ones_like(y[..., :1])], axis=-1)
    s = jnp.einsum('bxi,oij,byj->boxy', x, weight, y)
    if weight.shape[0] == 1:
        s = jnp.squeeze(s, axis=1)
    return s


if __name__ == "__main__":
    key = jax.random.PRNGKey(0)

    # --- Test 1: module default config (n_in=32, n_out=1, bias_x=bias_y=True) ---
    n_in, n_out = 32, 1
    B, Sx, Sy = 2, 8, 8
    kx, ky, kw, key = jax.random.split(key, 4)
    x = jax.random.normal(kx, (B, Sx, n_in), dtype=jnp.float32)
    y = jax.random.normal(ky, (B, Sy, n_in), dtype=jnp.float32)
    # NOTE: the PyTorch module zero-inits the weight (reset_parameters), which
    # would make the output trivially zero. A deterministic random weight of the
    # same shape (n_out, n_in+1, n_in+1) is used so the kernel is exercised.
    weight = 0.1 * jax.random.normal(kw, (n_out, n_in + 1, n_in + 1),
                                     dtype=jnp.float32)

    out = jax.block_until_ready(biaffine_forward(x, y, weight))
    ref = _reference(x, y, weight)
    assert out.shape == ref.shape == (B, Sx, Sy), (out.shape, ref.shape)
    assert jnp.allclose(out, ref, atol=1e-4, rtol=1e-4), "mismatch vs reference (1)"

    # --- Test 2: multi-label / ragged shapes (exercises padding + n_out>1) ------
    n_in2, n_out2 = 48, 2
    B2, Sx2, Sy2 = 3, 20, 24
    kx2, ky2, kw2, key = jax.random.split(key, 4)
    x2 = jax.random.normal(kx2, (B2, Sx2, n_in2), dtype=jnp.float32)
    y2 = jax.random.normal(ky2, (B2, Sy2, n_in2), dtype=jnp.float32)
    w2 = 0.1 * jax.random.normal(kw2, (n_out2, n_in2 + 1, n_in2 + 1),
                                 dtype=jnp.float32)
    out2 = jax.block_until_ready(biaffine_forward(x2, y2, w2))
    ref2 = _reference(x2, y2, w2)
    assert out2.shape == ref2.shape == (B2, n_out2, Sx2, Sy2), (out2.shape, ref2.shape)
    assert jnp.allclose(out2, ref2, atol=1e-4, rtol=1e-4), "mismatch vs reference (2)"

    print("KERNEL_OK")
</pallas_src>

<mosaic_0001>
module attributes {stable_mosaic.version = 11 : i64} {
  func.func @_biaffine_kernel(%arg0: i32, %arg1: i32, %arg2: i32, %arg3: i32, %arg4: memref<1x8x32xf32, #tpu.memory_space<vmem>>, %arg5: memref<1x32x32xf32, #tpu.memory_space<vmem>>, %arg6: memref<1x1x32xf32, #tpu.memory_space<vmem>>, %arg7: memref<1x32x1xf32, #tpu.memory_space<vmem>>, %arg8: memref<1x1x1xf32, #tpu.memory_space<vmem>>, %arg9: memref<1x128x32xf32, #tpu.memory_space<vmem>>, %arg10: memref<1x1x8x128xf32, #tpu.memory_space<vmem>>) attributes {dimension_semantics = [#tpu.dimension_semantics<parallel>, #tpu.dimension_semantics<parallel>, #tpu.dimension_semantics<parallel>, #tpu.dimension_semantics<parallel>], iteration_bounds = array<i64: 2, 1, 1, 1>, scalar_prefetch = 0 : i64, scratch_operands = 0 : i64, tpu.core_type = #tpu.core_type<tc>, window_params = [{transform_indices = @transform_0, window_bounds = array<i64: 1, 8, 32>}, {transform_indices = @transform_1, window_bounds = array<i64: 1, 32, 32>}, {transform_indices = @transform_2, window_bounds = array<i64: 1, 1, 32>}, {transform_indices = @transform_3, window_bounds = array<i64: 1, 32, 1>}, {transform_indices = @transform_4, window_bounds = array<i64: 1, 1, 1>}, {transform_indices = @transform_5, window_bounds = array<i64: 1, 128, 32>}, {transform_indices = @transform_6, window_bounds = array<i64: 1, 1, 8, 128>}]} {
    %c0 = arith.constant 0 : index
    %c0_0 = arith.constant 0 : index
    %c0_1 = arith.constant 0 : index
    %0 = vector.load %arg4[%c0, %c0_0, %c0_1] : memref<1x8x32xf32, #tpu.memory_space<vmem>>, vector<1x8x32xf32>
    %c0_2 = arith.constant 0 : index
    %c0_3 = arith.constant 0 : index
    %c0_4 = arith.constant 0 : index
    %1 = vector.load %arg5[%c0_2, %c0_3, %c0_4] : memref<1x32x32xf32, #tpu.memory_space<vmem>>, vector<1x32x32xf32>
    %2 = vector.shape_cast %1 : vector<1x32x32xf32> to vector<32x32xf32>
    %3 = vector.shape_cast %0 : vector<1x8x32xf32> to vector<8x32xf32>
    %cst = arith.constant dense<0.000000e+00> : vector<8x32xf32>
    %4 = tpu.matmul %3, %2, %cst {dimension_numbers = #tpu.dot_dimension_numbers<[1], [0], [0], [1], [0, 0, 1, 1], [], []>} : vector<8x32xf32>, vector<32x32xf32>, vector<8x32xf32> -> vector<8x32xf32>
    %c0_5 = arith.constant 0 : index
    %c0_6 = arith.constant 0 : index
    %c0_7 = arith.constant 0 : index
    %5 = vector.load %arg6[%c0_5, %c0_6, %c0_7] : memref<1x1x32xf32, #tpu.memory_space<vmem>>, vector<1x1x32xf32>
    %6 = vector.shape_cast %5 : vector<1x1x32xf32> to vector<1x32xf32>
    %7 = vector.broadcast %6 : vector<1x32xf32> to vector<8x32xf32>
    %8 = arith.addf %4, %7 : vector<8x32xf32>
    %9 = vector.shape_cast %8 : vector<8x32xf32> to vector<1x8x32xf32>
    %c0_8 = arith.constant 0 : index
    %c0_9 = arith.constant 0 : index
    %c0_10 = arith.constant 0 : index
    %10 = vector.load %arg9[%c0_8, %c0_9, %c0_10] : memref<1x128x32xf32, #tpu.memory_space<vmem>>, vector<1x128x32xf32>
    %cst_11 = arith.constant dense<0.000000e+00> : vector<1x8x128xf32>
    %11 = tpu.matmul %9, %10, %cst_11 {dimension_numbers = #tpu.dot_dimension_numbers<[2], [2], [1], [1], [0, 0, 0, 1, 1, 1], [0], [0]>} : vector<1x8x32xf32>, vector<1x128x32xf32>, vector<1x8x128xf32> -> vector<1x8x128xf32>
    %c0_12 = arith.constant 0 : index
    %c0_13 = arith.constant 0 : index
    %c0_14 = arith.constant 0 : index
    %12 = vector.load %arg7[%c0_12, %c0_13, %c0_14] : memref<1x32x1xf32, #tpu.memory_space<vmem>>, vector<1x32x1xf32>
    %13 = vector.shape_cast %12 : vector<1x32x1xf32> to vector<32x1xf32>
    %cst_15 = arith.constant dense<0.000000e+00> : vector<1x8x1xf32>
    %14 = tpu.matmul %0, %13, %cst_15 {dimension_numbers = #tpu.dot_dimension_numbers<[2], [0], [0, 1], [1], [0, 0, 0, 1, 1, 1], [], []>} : vector<1x8x32xf32>, vector<32x1xf32>, vector<1x8x1xf32> -> vector<1x8x1xf32>
    %c0_16 = arith.constant 0 : index
    %c0_17 = arith.constant 0 : index
    %c0_18 = arith.constant 0 : index
    %15 = vector.load %arg8[%c0_16, %c0_17, %c0_18] : memref<1x1x1xf32, #tpu.memory_space<vmem>>, vector<1x1x1xf32>
    %16 = vector.shape_cast %15 : vector<1x1x1xf32> to vector<1x1xf32>
    %17 = vector.shape_cast %16 : vector<1x1xf32> to vector<1x1x1xf32>
    %18 = vector.broadcast %17 : vector<1x1x1xf32> to vector<1x8x1xf32>
    %19 = arith.addf %14, %18 : vector<1x8x1xf32>
    %20 = vector.broadcast %19 : vector<1x8x1xf32> to vector<1x8x128xf32>
    %21 = arith.addf %11, %20 : vector<1x8x128xf32>
    %c0_19 = arith.constant 0 : index
    %c0_20 = arith.constant 0 : index
    %c0_21 = arith.constant 0 : index
    %c0_22 = arith.constant 0 : index
    %22 = vector.load %arg10[%c0_19, %c0_20, %c0_21, %c0_22] : memref<1x1x8x128xf32, #tpu.memory_space<vmem>>, vector<1x1x8x128xf32>
    %23 = vector.shape_cast %22 : vector<1x1x8x128xf32> to vector<1x8x128xf32>
    %24 = vector.shape_cast %21 : vector<1x8x128xf32> to vector<1x1x8x128xf32>
    tpu.vector_store %arg10[%c0_19, %c0_20, %c0_21, %c0_22], %24 {strides = array<i32>} : memref<1x1x8x128xf32, #tpu.memory_space<vmem>>, vector<1x1x8x128xf32>,
    return
  }
  func.func @transform_0(%arg0: i32, %arg1: i32, %arg2: i32, %arg3: i32) -> (i32, i32, i32) {
    %c0_i32 = arith.constant 0 : i32
    %c0_i32_0 = arith.constant 0 : i32
    return %arg0, %arg1, %c0_i32 : i32, i32, i32
  }
  func.func @transform_1(%arg0: i32, %arg1: i32, %arg2: i32, %arg3: i32) -> (i32, i32, i32) {
    %c0_i32 = arith.constant 0 : i32
    %c0_i32_0 = arith.constant 0 : i32
    %c0_i32_1 = arith.constant 0 : i32
    return %arg3, %c0_i32, %c0_i32_0 : i32, i32, i32
  }
  func.func @transform_2(%arg0: i32, %arg1: i32, %arg2: i32, %arg3: i32) -> (i32, i32, i32) {
    %c0_i32 = arith.constant 0 : i32
    %c0_i32_0 = arith.constant 0 : i32
    %c0_i32_1 = arith.constant 0 : i32
    return %arg3, %c0_i32, %c0_i32_0 : i32, i32, i32
  }
  func.func @transform_3(%arg0: i32, %arg1: i32, %arg2: i32, %arg3: i32) -> (i32, i32, i32) {
    %c0_i32 = arith.constant 0 : i32
    %c0_i32_0 = arith.constant 0 : i32
    %c0_i32_1 = arith.constant 0 : i32
    return %arg3, %c0_i32, %c0_i32_0 : i32, i32, i32
  }
  func.func @transform_4(%arg0: i32, %arg1: i32, %arg2: i32, %arg3: i32) -> (i32, i32, i32) {
    %c0_i32 = arith.constant 0 : i32
    %c0_i32_0 = arith.constant 0 : i32
    %c0_i32_1 = arith.constant 0 : i32
    return %arg3, %c0_i32, %c0_i32_0 : i32, i32, i32
  }
  func.func @transform_5(%arg0: i32, %arg1: i32, %arg2: i32, %arg3: i32) -> (i32, i32, i32) {
    %c0_i32 = arith.constant 0 : i32
    %c0_i32_0 = arith.constant 0 : i32
    return %arg0, %arg2, %c0_i32 : i32, i32, i32
  }
  func.func @transform_6(%arg0: i32, %arg1: i32, %arg2: i32, %arg3: i32) -> (i32, i32, i32, i32) {
    %c0_i32 = arith.constant 0 : i32
    return %arg0, %arg3, %arg1, %arg2 : i32, i32, i32, i32
  }
}

</mosaic_0001>

<llo_original>
// kernel: biaffine_forward.1
$region0: #{biaffine_forward.1}
  #allocation0 [shape = 'u32[]', space=smem, size = 0x4, offset = 0x4, fixed_abs, tag = 'smem constant byte address 0x4 - core index']
  #allocation1 [shape = 'u32[144,128]{1,0:T(1,128)}', space=vmem, size = 0x12000, scoped, tag = 'internal scratch']
  #allocation2 [shape = 'f32[1,1,1]{2,1,0:T(1,128)S(1)}', space=vmem, size = 0x200, scoped, tag = 'scoped memory for biaffine_forward.1']
  %s0 = inlined_call_operand.vmem [shape: f32[2,8,32], index: 0, kind: input, shape index: {}]
  %s1 = inlined_call_operand.vmem [shape: f32[1,32,32], index: 1, kind: input, shape index: {}]
  %s2 = inlined_call_operand.vmem [shape: f32[1,1,32], index: 2, kind: input, shape index: {}]
  %s3 = inlined_call_operand.vmem [shape: f32[1,32,1], index: 3, kind: input, shape index: {}]
  %s4 = inlined_call_operand.<no memory space> [shape: f32[1,1,1], index: 4, kind: input, shape index: {}]
  %s5 = inlined_call_operand.vmem [shape: f32[2,128,32], index: 5, kind: input, shape index: {}]
  %s6 = inlined_call_operand.vmem [shape: f32[2,1,8,128], index: 6, kind: output, shape index: {}]
  %s7 = sld [smem:[#allocation0]]
  $region57: #{biaffine_forward.1} parent=0
    _
  %s9 = ssub.s32 1, %s7
  %s10 = scalar_select 0, %s9, %s7
  %v11 = vstv %s4
  %12 = vst [vmem:[#allocation2] sm:$0x1] %v11
  loop: start=0, step=1, limit=4
  $region2: #{biaffine_forward.1} parent=0 // loop_pre_header
    _
  $region3: #{biaffine_forward.1} parent=0 // loop_header
    %s14 = sphi 0, %s18
    %p15 = scmp.ge.s32.totalorder %s14, 4
    %s21 = sphi 0, %s47
    %s22 = sphi 0, %s43
    %s23 = sphi 0, %s39
    %s24 = sphi 0, %s35
    %s25 = sphi 0, %s21
    %s26 = sphi 0, %s22
    %s27 = sphi 0, %s23
    %s28 = sphi 0, %s24
    %s29 = sphi 0, %s25
    %s30 = sphi 0, %s26
    %s31 = sphi 0, %s27
    %s32 = sphi 0, %s28
    %s52 = sphi 0, %s54
    %s55 = sphi 0, %s52
    %s56 = sphi 0, %s55
    %s72 = sphi 0, %s56
    %s78 = sphi 0, %s80
    %s81 = sphi 0, %s78
    %s82 = sphi 0, %s81
    %s98 = sphi 0, %s82
    %s104 = sphi 0, %s106
    %s107 = sphi 0, %s104
    %s108 = sphi 0, %s107
    %s124 = sphi 0, %s108
    %s130 = sphi 0, %s132
    %s133 = sphi 0, %s130
    %s134 = sphi 0, %s133
    %s150 = sphi 0, %s134
    %s156 = sphi 0, %s158
    %s159 = sphi 0, %s156
    %s160 = sphi 0, %s159
    %s176 = sphi 0, %s160
    %s184 = sphi 0, %s186
    %s187 = sphi 0, %s184
    %s188 = sphi 0, %s187
    %s204 = sphi 0, %s188
    %s216 = sphi 0, %s218
    %s219 = sphi 0, %s216
    %s220 = sphi 0, %s219
    %s236 = sphi 0, %s220
  $region4: #{biaffine_forward.1} parent=0 // loop_header_branch
    %17 = sbr.rel (%p15) target = $region8
  $region5: #{biaffine_forward.1} parent=0 // loop_body
    %s19 = ssub.s32 %s14, 1
    %s20 = ssub.s32 %s14, 2
    %s33 = sadd.s32 1, %s24
    %p34 = scmp.ge.s32.totalorder %s33, 1
    %s35 = scalar_select %p34, 0, %s33
    %s36 = sadd.s32 1, %s23
    %s37 = scalar_select %p34, %s36, %s23
    %p38 = scmp.ge.s32.totalorder %s37, 1
    %s39 = scalar_select %p38, 0, %s37
    %s40 = sadd.s32 1, %s22
    %s41 = scalar_select %p38, %s40, %s22
    %p42 = scmp.ge.s32.totalorder %s41, 1
    %s43 = scalar_select %p42, 0, %s41
    %s44 = sadd.s32 1, %s21
    %s45 = scalar_select %p42, %s44, %s21
    %p46 = scmp.ge.s32.totalorder %s45, 2
    %s47 = scalar_select %p46, 0, %s45
    %s48 = ssub.s32 %s21, %s47
    %s49 = ssub.s32 %s22, %s43
    %s50 = sor.u32 %s48, %s49
    %p51 = scmp.eq.s32.totalorder %s50, 0
    %s53 = sadd.s32 %s52, 1
    %s54 = scalar_select %p51, %s52, %s53
    %p57 = pneg %p51
    %p58 = scmp.eq.s32.totalorder %s14, 1
    %p59 = por %p57, %p58
    %p60 = scmp.ne.s32.totalorder %s52, %s55
    %p61 = scmp.eq.s32.totalorder %s14, 0
    %p62 = por %p60, %p61
    %p63 = scmp.ne.s32.totalorder %s52, %s55
    %p64 = scmp.eq.s32.totalorder %s19, 1
    %p65 = por %p63, %p64
    %p66 = scmp.ne.s32.totalorder %s55, %s56
    %p67 = scmp.eq.s32.totalorder %s19, 0
    %p68 = por %p66, %p67
    %p69 = scmp.ne.s32.totalorder %s55, %s56
    %p70 = scmp.eq.s32.totalorder %s20, 1
    %p71 = por %p69, %p70
    %p73 = scmp.ne.s32.totalorder %s56, %s72
    %p74 = scmp.eq.s32.totalorder %s20, 0
    %p75 = por %p73, %p74
    %s76 = ssub.s32 %s24, %s35
    %p77 = scmp.eq.s32.totalorder %s76, 0
    %s79 = sadd.s32 %s78, 1
    %s80 = scalar_select %p77, %s78, %s79
    %p83 = pneg %p77
    %p84 = scmp.eq.s32.totalorder %s14, 1
    %p85 = por %p83, %p84
    %p86 = scmp.ne.s32.totalorder %s78, %s81
    %p87 = scmp.eq.s32.totalorder %s14, 0
    %p88 = por %p86, %p87
    %p89 = scmp.ne.s32.totalorder %s78, %s81
    %p90 = scmp.eq.s32.totalorder %s19, 1
    %p91 = por %p89, %p90
    %p92 = scmp.ne.s32.totalorder %s81, %s82
    %p93 = scmp.eq.s32.totalorder %s19, 0
    %p94 = por %p92, %p93
    %p95 = scmp.ne.s32.totalorder %s81, %s82
    %p96 = scmp.eq.s32.totalorder %s20, 1
    %p97 = por %p95, %p96
    %p99 = scmp.ne.s32.totalorder %s82, %s98
    %p100 = scmp.eq.s32.totalorder %s20, 0
    %p101 = por %p99, %p100
    %s102 = ssub.s32 %s24, %s35
    %p103 = scmp.eq.s32.totalorder %s102, 0
    %s105 = sadd.s32 %s104, 1
    %s106 = scalar_select %p103, %s104, %s105
    %p109 = pneg %p103
    %p110 = scmp.eq.s32.totalorder %s14, 1
    %p111 = por %p109, %p110
    %p112 = scmp.ne.s32.totalorder %s104, %s107
    %p113 = scmp.eq.s32.totalorder %s14, 0
    %p114 = por %p112, %p113
    %p115 = scmp.ne.s32.totalorder %s104, %s107
    %p116 = scmp.eq.s32.totalorder %s19, 1
    %p117 = por %p115, %p116
    %p118 = scmp.ne.s32.totalorder %s107, %s108
    %p119 = scmp.eq.s32.totalorder %s19, 0
    %p120 = por %p118, %p119
    %p121 = scmp.ne.s32.totalorder %s107, %s108
    %p122 = scmp.eq.s32.totalorder %s20, 1
    %p123 = por %p121, %p122
    %p125 = scmp.ne.s32.totalorder %s108, %s124
    %p126 = scmp.eq.s32.totalorder %s20, 0
    %p127 = por %p125, %p126
    %s128 = ssub.s32 %s24, %s35
    %p129 = scmp.eq.s32.totalorder %s128, 0
    %s131 = sadd.s32 %s130, 1
    %s132 = scalar_select %p129, %s130, %s131
    %p135 = pneg %p129
    %p136 = scmp.eq.s32.totalorder %s14, 1
    %p137 = por %p135, %p136
    %p138 = scmp.ne.s32.totalorder %s130, %s133
    %p139 = scmp.eq.s32.totalorder %s14, 0
    %p140 = por %p138, %p139
    %p141 = scmp.ne.s32.totalorder %s130, %s133
    %p142 = scmp.eq.s32.totalorder %s19, 1
    %p143 = por %p141, %p142
    %p144 = scmp.ne.s32.totalorder %s133, %s134
    %p145 = scmp.eq.s32.totalorder %s19, 0
    %p146 = por %p144, %p145
    %p147 = scmp.ne.s32.totalorder %s133, %s134
    %p148 = scmp.eq.s32.totalorder %s20, 1
    %p149 = por %p147, %p148
    %p151 = scmp.ne.s32.totalorder %s134, %s150
    %p152 = scmp.eq.s32.totalorder %s20, 0
    %p153 = por %p151, %p152
    %s154 = ssub.s32 %s24, %s35
    %p155 = scmp.eq.s32.totalorder %s154, 0
    %s157 = sadd.s32 %s156, 1
    %s158 = scalar_select %p155, %s156, %s157
    %p161 = pneg %p155
    %p162 = scmp.eq.s32.totalorder %s14, 1
    %p163 = por %p161, %p162
    %p164 = scmp.ne.s32.totalorder %s156, %s159
    %p165 = scmp.eq.s32.totalorder %s14, 0
    %p166 = por %p164, %p165
    %p167 = scmp.ne.s32.totalorder %s156, %s159
    %p168 = scmp.eq.s32.totalorder %s19, 1
    %p169 = por %p167, %p168
    %p170 = scmp.ne.s32.totalorder %s159, %s160
    %p171 = scmp.eq.s32.totalorder %s19, 0
    %p172 = por %p170, %p171
    %p173 = scmp.ne.s32.totalorder %s159, %s160
    %p174 = scmp.eq.s32.totalorder %s20, 1
    %p175 = por %p173, %p174
    %p177 = scmp.ne.s32.totalorder %s160, %s176
    %p178 = scmp.eq.s32.totalorder %s20, 0
    %p179 = por %p177, %p178
    %s180 = ssub.s32 %s21, %s47
    %s181 = ssub.s32 %s23, %s39
    %s182 = sor.u32 %s180, %s181
    %p183 = scmp.eq.s32.totalorder %s182, 0
    %s185 = sadd.s32 %s184, 1
    %s186 = scalar_select %p183, %s184, %s185
    %p189 = pneg %p183
    %p190 = scmp.eq.s32.totalorder %s14, 1
    %p191 = por %p189, %p190
    %p192 = scmp.ne.s32.totalorder %s184, %s187
    %p193 = scmp.eq.s32.totalorder %s14, 0
    %p194 = por %p192, %p193
    %p195 = scmp.ne.s32.totalorder %s184, %s187
    %p196 = scmp.eq.s32.totalorder %s19, 1
    %p197 = por %p195, %p196
    %p198 = scmp.ne.s32.totalorder %s187, %s188
    %p199 = scmp.eq.s32.totalorder %s19, 0
    %p200 = por %p198, %p199
    %p201 = scmp.ne.s32.totalorder %s187, %s188
    %p202 = scmp.eq.s32.totalorder %s20, 1
    %p203 = por %p201, %p202
    %p205 = scmp.ne.s32.totalorder %s188, %s204
    %p206 = scmp.eq.s32.totalorder %s20, 0
    %p207 = por %p205, %p206
    %s208 = ssub.s32 %s21, %s47
    %s209 = ssub.s32 %s24, %s35
    %s210 = sor.u32 %s208, %s209
    %s211 = ssub.s32 %s22, %s43
    %s212 = sor.u32 %s210, %s211
    %s213 = ssub.s32 %s23, %s39
    %s214 = sor.u32 %s212, %s213
    %p215 = scmp.eq.s32.totalorder %s214, 0
    %s217 = sadd.s32 %s216, 1
    %s218 = scalar_select %p215, %s216, %s217
    %p221 = pneg %p215
    %p222 = scmp.eq.s32.totalorder %s14, 1
    %p223 = por %p221, %p222
    %p224 = scmp.ne.s32.totalorder %s216, %s219
    %p225 = scmp.eq.s32.totalorder %s14, 0
    %p226 = por %p224, %p225
    %p227 = scmp.ne.s32.totalorder %s216, %s219
    %p228 = scmp.eq.s32.totalorder %s19, 1
    %p229 = por %p227, %p228
    %p230 = scmp.ne.s32.totalorder %s219, %s220
    %p231 = scmp.eq.s32.totalorder %s19, 0
    %p232 = por %p230, %p231
    %p233 = scmp.ne.s32.totalorder %s219, %s220
    %p234 = scmp.eq.s32.totalorder %s20, 1
    %p235 = por %p233, %p234
    %p237 = scmp.ne.s32.totalorder %s220, %s236
    %p238 = scmp.eq.s32.totalorder %s20, 0
    %p239 = por %p237, %p238
    %p240 = scmp.le.s32.totalorder 1, %s14
    %p241 = scmp.lt.s32.totalorder %s14, 3
    %p242 = pnand %p240, %p241
    %p243 = pneg %p242
    // Predicated region
    $region9: #{biaffine_forward.1} parent=5 // pred_check
      _
    $region10: #{biaffine_forward.1} parent=5 // pred_check_branch
      %245 = sbr.rel (%p242) target = $region12
    $region11: #{biaffine_forward.1} parent=5 // pred_region
      %s246 = ssub.s32 %s14, 1
      // Predicated region
      $region13: #{biaffine_forward.1} parent=11 // pred_check
        %p247 = pneg %p94
      $region14: #{biaffine_forward.1} parent=11 // pred_check_branch
        %249 = sbr.rel (%p247) target = $region16
      $region15: #{biaffine_forward.1} parent=11 // pred_region
        %p250 = scmp.lt.s32.totalorder %s28, 0
        %s251 = scalar_select %p250, %s28, 0
        %s252 = smul.addr %s251, 4
        %s253 = smul.addr %s252, 8
        %s254 = scalar_lea.vmem %s1, %s253
      $region16: #{biaffine_forward.1} parent=11 // pred_fallthru
        _
      // Predicated region
      $region17: #{biaffine_forward.1} parent=11 // pred_check
        %p255 = pneg %p120
      $region18: #{biaffine_forward.1} parent=11 // pred_check_branch
        %257 = sbr.rel (%p255) target = $region20
      $region19: #{biaffine_forward.1} parent=11 // pred_region
        %p258 = scmp.lt.s32.totalorder %s28, 0
        %s259 = scalar_select %p258, %s28, 0
        %s260 = scalar_lea.vmem %s2, %s259
      $region20: #{biaffine_forward.1} parent=11 // pred_fallthru
        _
      // Predicated region
      $region21: #{biaffine_forward.1} parent=11 // pred_check
        %p261 = pneg %p146
      $region22: #{biaffine_forward.1} parent=11 // pred_check_branch
        %263 = sbr.rel (%p261) target = $region24
      $region23: #{biaffine_forward.1} parent=11 // pred_region
        %p264 = scmp.lt.s32.totalorder %s28, 0
        %s265 = scalar_select %p264, %s28, 0
        %s266 = smul.addr %s265, 4
        %s267 = smul.addr %s266, 8
        %s268 = scalar_lea.vmem %s3, %s267
      $region24: #{biaffine_forward.1} parent=11 // pred_fallthru
        _
      // Predicated region
      $region25: #{biaffine_forward.1} parent=11 // pred_check
        %p269 = pneg %p172
      $region26: #{biaffine_forward.1} parent=11 // pred_check_branch
        %271 = sbr.rel (%p269) target = $region28
      $region27: #{biaffine_forward.1} parent=11 // pred_region
        %p272 = scmp.lt.s32.totalorder %s28, 0
        %s273 = scalar_select %p272, %s28, 0
        %s274 = scalar_lea.vmem [#allocation2], %s273
      $region28: #{biaffine_forward.1} parent=11 // pred_fallthru
        _
    $region12: #{biaffine_forward.1} parent=5 // pred_fallthru
      _
    %p275 = scmp.lt.s32.totalorder %s14, 2
    // Predicated region
    $region29: #{biaffine_forward.1} parent=5 // pred_check
      %p276 = pneg %p275
    $region30: #{biaffine_forward.1} parent=5 // pred_check_branch
      %278 = sbr.rel (%p276) target = $region32
    $region31: #{biaffine_forward.1} parent=5 // pred_region
      // Predicated region
      $region33: #{biaffine_forward.1} parent=31 // pred_check
        %p279 = pneg %p62
      $region34: #{biaffine_forward.1} parent=31 // pred_check_branch
        %281 = sbr.rel (%p279) target = $region36
      $region35: #{biaffine_forward.1} parent=31 // pred_region
        %p282 = scmp.lt.s32.totalorder %s21, 1
        %s283 = scalar_select %p282, %s21, 1
        %p284 = scmp.lt.s32.totalorder %s22, 0
        %s285 = scalar_select %p284, %s22, 0
        %s286 = sadd.s32 %s285, %s283
        %s287 = smul.addr %s286, 8
        %s288 = scalar_lea.vmem %s0, %s287
      $region36: #{biaffine_forward.1} parent=31 // pred_fallthru
        _
      // Predicated region
      $region37: #{biaffine_forward.1} parent=31 // pred_check
        %p289 = pneg %p194
      $region38: #{biaffine_forward.1} parent=31 // pred_check_branch
        %291 = sbr.rel (%p289) target = $region40
      $region39: #{biaffine_forward.1} parent=31 // pred_region
        %s292 = smul.u32 16, %s23
        %p293 = scmp.lt.s32.totalorder %s21, 1
        %s294 = scalar_select %p293, %s21, 1
        %p295 = scmp.lt.s32.totalorder %s292, 15
        %s296 = scalar_select %p295, %s292, 15
        %s297 = smul.addr %s294, 16
        %s298 = sadd.s32 %s296, %s297
        %s299 = smul.addr %s298, 8
        %s300 = scalar_lea.vmem %s5, %s299
        %s301 = smul.u32 16, %s23
      $region40: #{biaffine_forward.1} parent=31 // pred_fallthru
        _
    $region32: #{biaffine_forward.1} parent=5 // pred_fallthru
      _
    %p302 = scmp.le.s32.totalorder 1, %s14
    %p303 = scmp.lt.s32.totalorder %s14, 3
    %p304 = pnand %p302, %p303
    %p305 = pneg %p304
    // Predicated region
    $region41: #{biaffine_forward.1} parent=5 // pred_check
      _
    $region42: #{biaffine_forward.1} parent=5 // pred_check_branch
      %307 = sbr.rel (%p304) target = $region44
    $region43: #{biaffine_forward.1} parent=5 // pred_region
      %s308 = ssub.s32 %s14, 1
      %p309 = scmp.lt.s32.totalorder %s25, 1
      %s310 = scalar_select %p309, %s25, 1
      %p311 = scmp.lt.s32.totalorder %s26, 0
      %s312 = scalar_select %p311, %s26, 0
      %s313 = sadd.s32 %s312, %s310
      %s314 = smul.addr %s313, 8
      %s315 = scalar_lea.vmem %s0, %s314
      %p316 = pneg %p68
      %p317 = pneg %p65
      %p318 = scmp.lt.s32.totalorder %s28, 0
      %s319 = scalar_select %p318, %s28, 0
      %s320 = smul.addr %s319, 4
      %s321 = smul.addr %s320, 8
      %s322 = scalar_lea.vmem %s1, %s321
      %p323 = pneg %p94
      %p324 = pneg %p91
      %p325 = scmp.lt.s32.totalorder %s28, 0
      %s326 = scalar_select %p325, %s28, 0
      %s327 = scalar_lea.vmem %s2, %s326
      %p328 = pneg %p120
      %p329 = pneg %p117
      %p330 = scmp.lt.s32.totalorder %s28, 0
      %s331 = scalar_select %p330, %s28, 0
      %s332 = smul.addr %s331, 4
      %s333 = smul.addr %s332, 8
      %s334 = scalar_lea.vmem %s3, %s333
      %p335 = pneg %p146
      %p336 = pneg %p143
      %p337 = scmp.lt.s32.totalorder %s28, 0
      %s338 = scalar_select %p337, %s28, 0
      %s339 = scalar_lea.vmem [#allocation2], %s338
      %p340 = pneg %p172
      %p341 = pneg %p169
      %s342 = smul.u32 16, %s27
      %p343 = scmp.lt.s32.totalorder %s25, 1
      %s344 = scalar_select %p343, %s25, 1
      %p345 = scmp.lt.s32.totalorder %s342, 15
      %s346 = scalar_select %p345, %s342, 15
      %s347 = smul.addr %s344, 16
      %s348 = sadd.s32 %s346, %s347
      %s349 = smul.addr %s348, 8
      %s350 = scalar_lea.vmem %s5, %s349
      %p351 = pneg %p200
      %p352 = pneg %p197
      %p353 = pneg %p232
      %p354 = pneg %p229
      %p355 = scmp.lt.s32.totalorder %s25, 1
      %s356 = scalar_select %p355, %s25, 1
      %p357 = scmp.lt.s32.totalorder %s28, 0
      %s358 = scalar_select %p357, %s28, 0
      %p359 = scmp.lt.s32.totalorder %s26, 0
      %s360 = scalar_select %p359, %s26, 0
      %p361 = scmp.lt.s32.totalorder %s27, 0
      %s362 = scalar_select %p361, %s27, 0
      %s363 = sadd.s32 %s362, %s360
      %s364 = sadd.s32 %s363, %s358
      %s365 = sadd.s32 %s364, %s356
      %s366 = smul.addr %s365, 8
      %s367 = scalar_lea.vmem %s6, %s366
      %p368 = scmp.lt.s32.totalorder %s25, 1
      %s369 = scalar_select %p368, %s25, 1
      %p370 = scmp.lt.s32.totalorder %s26, 0
      %s371 = scalar_select %p370, %s26, 0
      %s372 = sadd.s32 %s371, %s369
      %s373 = smul.addr %s372, 8
      %s374 = scalar_lea.vmem %s0, %s373
      %p375 = scmp.lt.s32.totalorder %s28, 0
      %s376 = scalar_select %p375, %s28, 0
      %s377 = smul.addr %s376, 4
      %s378 = smul.addr %s377, 8
      %s379 = scalar_lea.vmem %s1, %s378
      %p380 = scmp.lt.s32.totalorder %s28, 0
      %s381 = scalar_select %p380, %s28, 0
      %s382 = scalar_lea.vmem %s2, %s381
      %p383 = scmp.lt.s32.totalorder %s28, 0
      %s384 = scalar_select %p383, %s28, 0
      %s385 = smul.addr %s384, 4
      %s386 = smul.addr %s385, 8
      %s387 = scalar_lea.vmem %s3, %s386
      %p388 = scmp.lt.s32.totalorder %s28, 0
      %s389 = scalar_select %p388, %s28, 0
      %s390 = scalar_lea.vmem [#allocation2], %s389
      %s391 = smul.u32 16, %s27
      %p392 = scmp.lt.s32.totalorder %s25, 1
      %s393 = scalar_select %p392, %s25, 1
      %p394 = scmp.lt.s32.totalorder %s391, 15
      %s395 = scalar_select %p394, %s391, 15
      %s396 = smul.addr %s393, 16
      %s397 = sadd.s32 %s395, %s396
      %s398 = smul.addr %s397, 8
      %s399 = scalar_lea.vmem %s5, %s398
      %s400 = smul.u32 16, %s27
      %p401 = scmp.lt.s32.totalorder %s25, 1
      %s402 = scalar_select %p401, %s25, 1
      %p403 = scmp.lt.s32.totalorder %s28, 0
      %s404 = scalar_select %p403, %s28, 0
      %p405 = scmp.lt.s32.totalorder %s26, 0
      %s406 = scalar_select %p405, %s26, 0
      %p407 = scmp.lt.s32.totalorder %s27, 0
      %s408 = scalar_select %p407, %s27, 0
      %s409 = sadd.s32 %s408, %s406
      %s410 = sadd.s32 %s409, %s404
      %s411 = sadd.s32 %s410, %s402
      %s412 = smul.addr %s411, 8
      %s413 = scalar_lea.vmem %s6, %s412
      %v414 = vld [vmem:[%s374] sm:$0xff]
      %v415 = vld [vmem:[%s379] sm:$0xff]
      %v416 = vld [vmem:[%s379 + $0x8] sm:$0xff]
      %v417 = vld [vmem:[%s379 + $0x10] sm:$0xff]
      %v418 = vld [vmem:[%s379 + $0x18] sm:$0xff]
      %v419 = vld [vmem:[%s382] sm:$0x1]
      %v421 = vlaneseq
      %v422 = vshrl.u32 %v421, 7
      %v423 = vsub.s32 0, %v422
      %v424 = vrot.slane %v419, %v423
      %vm426 = vcmask 261120
      %v428 = vsel %vm426, %v414, 0
      %430 = vmatprep.subr.mxu0 0.0
      %431 = vmatpush1.msra.mxu0 %v415
      %432 = vmatprep.subr.mxu0 0.0
      %433 = vmatpush1.msra.mxu0 %v416
      %434 = vmatprep.subr.mxu0 0.0
      %435 = vmatpush1.msra.mxu0 %v417
      %436 = vmatprep.subr.mxu0 0.0
      %437 = vmatpush1.msra.mxu0 %v418
      %438 = vmatprep.subr.mxu0 0.0
      %439 = vmatpush1.msra.mxu0 0.0
      %440 = vmatprep.subr.mxu0 0.0
      %441 = vmatpush1.msra.mxu0 0.0
      %442 = vmatprep.subr.mxu0 0.0
      %443 = vmatpush1.msra.mxu0 0.0
      %444 = vmatprep.subr.mxu0 0.0
      %445 = vmatpush1.msra.mxu0 0.0
      %446 = vmatprep.subr.mxu0 0.0
      %447 = vmatpush1.msra.mxu0 0.0
      %448 = vmatprep.subr.mxu0 0.0
      %449 = vmatpush1.msra.mxu0 0.0
      %450 = vmatprep.subr.mxu0 0.0
      %451 = vmatpush1.msra.mxu0 0.0
      %452 = vmatprep.subr.mxu0 0.0
      %453 = vmatpush1.msra.mxu0 0.0
      %454 = vmatprep.subr.mxu0 0.0
      %455 = vmatpush1.msra.mxu0 0.0
      %456 = vmatprep.subr.mxu0 0.0
      %457 = vmatpush1.msra.mxu0 0.0
      %458 = vmatprep.subr.mxu0 0.0
      %459 = vmatpush1.msra.mxu0 0.0
      %460 = vmatprep.subr.mxu0 0.0
      %461 = vmatpush1.msra.mxu0 0.0
      %462 = vmatprep.subr.mxu0 0.0
      %463 = vmatpush1.msra.mxu0 0.0
      %464 = vmatprep.subr.mxu0 0.0
      %465 = vmatpush1.msra.mxu0 0.0
      %466 = vmatprep.subr.mxu0 0.0
      %467 = vmatpush1.msra.mxu0 0.0
      %468 = vmatprep.subr.mxu0 0.0
      %469 = vmatpush1.msra.mxu0 0.0
      %470 = vmatprep.subr.mxu0 0.0
      %471 = vmatpush1.msra.mxu0 0.0
      %472 = vmatprep.subr.mxu0 0.0
      %473 = vmatpush1.msra.mxu0 0.0
      %474 = vmatprep.subr.mxu0 0.0
      %475 = vmatpush1.msra.mxu0 0.0
      %476 = vmatprep.subr.mxu0 0.0
      %477 = vmatpush1.msra.mxu0 0.0
      %478 = vmatprep.subr.mxu0 0.0
      %479 = vmatpush1.msra.mxu0 0.0
      %480 = vmatprep.subr.mxu0 0.0
      %481 = vmatpush1.msra.mxu0 0.0
      %482 = vmatprep.subr.mxu0 0.0
      %483 = vmatpush1.msra.mxu0 0.0
      %484 = vmatprep.subr.mxu0 0.0
      %485 = vmatpush1.msra.mxu0 0.0
      %486 = vmatprep.subr.mxu0 0.0
      %487 = vmatpush1.msra.mxu0 0.0
      %488 = vmatprep.subr.mxu0 0.0
      %489 = vmatpush1.msra.mxu0 0.0
      %490 = vmatprep.subr.mxu0 0.0
      %491 = vmatpush1.msra.mxu0 0.0
      %492 = vmatprep.subr.mxu0 0.0
      %493 = vmatpush1.msra.mxu0 0.0
      %494 = vmatprep.mubr.f32.mxu0 0.0
      %495 = vmatmul.mubr.f32.gmra.mrb[0].mxu0 %v428
      %v496 = vpop.f32.mrb[0].mxu0
      %v497 = vadd.f32 %v424, %v496
      %v498 = vpop.f32.mrb[0].mxu0
      %499 = vdwg.mxu0
      %v500 = vld [vmem:[%s399] sm:$0xff]
      %v501 = vld [vmem:[%s399 + $0x8] sm:$0xff]
      %v502 = vld [vmem:[%s399 + $0x10] sm:$0xff]
      %v503 = vld [vmem:[%s399 + $0x18] sm:$0xff]
      %v504 = vld [vmem:[%s399 + $0x20] sm:$0xff]
      %v505 = vld [vmem:[%s399 + $0x28] sm:$0xff]
      %v506 = vld [vmem:[%s399 + $0x30] sm:$0xff]
      %v507 = vld [vmem:[%s399 + $0x38] sm:$0xff]
      %v508 = vld [vmem:[%s399 + $0x40] sm:$0xff]
      %v509 = vld [vmem:[%s399 + $0x48] sm:$0xff]
      %v510 = vld [vmem:[%s399 + $0x50] sm:$0xff]
      %v511 = vld [vmem:[%s399 + $0x58] sm:$0xff]
      %v512 = vld [vmem:[%s399 + $0x60] sm:$0xff]
      %v513 = vld [vmem:[%s399 + $0x68] sm:$0xff]
      %v514 = vld [vmem:[%s399 + $0x70] sm:$0xff]
      %v515 = vld [vmem:[%s399 + $0x78] sm:$0xff]
      %v516 = vld [vmem:[%s387] sm:$0xff]
      %v517 = vld [vmem:[%s387 + $0x8] sm:$0xff]
      %v518 = vld [vmem:[%s387 + $0x10] sm:$0xff]
      %v519 = vld [vmem:[%s387 + $0x18] sm:$0xff]
      %v520 = vld [vmem:[%s390] sm:$0x1]
      %v522 = vlaneseq
      %v523 = vshrl.u32 %v522, 7
      %v524 = vsub.s32 0, %v523
      %v525 = vrot.slane %v520, %v524
      %527 = vmatprep.subr.mxu0 0.0
      %528 = vmatpush1.msra.mxu0 %v516
      %529 = vmatprep.subr.mxu0 0.0
      %530 = vmatpush1.msra.mxu0 %v517
      %531 = vmatprep.subr.mxu0 0.0
      %532 = vmatpush1.msra.mxu0 %v518
      %533 = vmatprep.subr.mxu0 0.0
      %534 = vmatpush1.msra.mxu0 %v519
      %535 = vmatprep.subr.mxu0 0.0
      %536 = vmatpush1.msra.mxu0 0.0
      %537 = vmatprep.subr.mxu0 0.0
      %538 = vmatpush1.msra.mxu0 0.0
      %539 = vmatprep.subr.mxu0 0.0
      %540 = vmatpush1.msra.mxu0 0.0
      %541 = vmatprep.subr.mxu0 0.0
      %542 = vmatpush1.msra.mxu0 0.0
      %543 = vmatprep.subr.mxu0 0.0
      %544 = vmatpush1.msra.mxu0 0.0
      %545 = vmatprep.subr.mxu0 0.0
      %546 = vmatpush1.msra.mxu0 0.0
      %547 = vmatprep.subr.mxu0 0.0
      %548 = vmatpush1.msra.mxu0 0.0
      %549 = vmatprep.subr.mxu0 0.0
      %550 = vmatpush1.msra.mxu0 0.0
      %551 = vmatprep.subr.mxu0 0.0
      %552 = vmatpush1.msra.mxu0 0.0
      %553 = vmatprep.subr.mxu0 0.0
      %554 = vmatpush1.msra.mxu0 0.0
      %555 = vmatprep.subr.mxu0 0.0
      %556 = vmatpush1.msra.mxu0 0.0
      %557 = vmatprep.subr.mxu0 0.0
      %558 = vmatpush1.msra.mxu0 0.0
      %559 = vmatprep.subr.mxu0 0.0
      %560 = vmatpush1.msra.mxu0 0.0
      %561 = vmatprep.subr.mxu0 0.0
      %562 = vmatpush1.msra.mxu0 0.0
      %563 = vmatprep.subr.mxu0 0.0
      %564 = vmatpush1.msra.mxu0 0.0
      %565 = vmatprep.subr.mxu0 0.0
      %566 = vmatpush1.msra.mxu0 0.0
      %567 = vmatprep.subr.mxu0 0.0
      %568 = vmatpush1.msra.mxu0 0.0
      %569 = vmatprep.subr.mxu0 0.0
      %570 = vmatpush1.msra.mxu0 0.0
      %571 = vmatprep.subr.mxu0 0.0
      %572 = vmatpush1.msra.mxu0 0.0
      %573 = vmatprep.subr.mxu0 0.0
      %574 = vmatpush1.msra.mxu0 0.0
      %575 = vmatprep.subr.mxu0 0.0
      %576 = vmatpush1.msra.mxu0 0.0
      %577 = vmatprep.subr.mxu0 0.0
      %578 = vmatpush1.msra.mxu0 0.0
      %579 = vmatprep.subr.mxu0 0.0
      %580 = vmatpush1.msra.mxu0 0.0
      %581 = vmatprep.subr.mxu0 0.0
      %582 = vmatpush1.msra.mxu0 0.0
      %583 = vmatprep.subr.mxu0 0.0
      %584 = vmatpush1.msra.mxu0 0.0
      %585 = vmatprep.subr.mxu0 0.0
      %586 = vmatpush1.msra.mxu0 0.0
      %587 = vmatprep.subr.mxu0 0.0
      %588 = vmatpush1.msra.mxu0 0.0
      %589 = vmatprep.subr.mxu0 0.0
      %590 = vmatpush1.msra.mxu0 0.0
      %591 = vmatprep.mubr.f32.mxu0 0.0
      %592 = vmatmul.mubr.f32.gmra.mrb[0].mxu0 %v428
      %v593 = vpop.f32.mrb[0].mxu0
      %v594 = vadd.f32 %v525, %v593
      %v595 = vpop.f32.mrb[0].mxu0
      %596 = vdwg.mxu0
      %598 = vset.pattern.permute.xlu0 0
      %599 = vperm.xlu0 %598, %v594
      %v600 = vpop.permute.xlu0 %599
      %v603 = vsel %vm426, %v497, 0
      %v606 = vsel %vm426, %v500, 0
      %v609 = vsel %vm426, %v501, 0
      %v612 = vsel %vm426, %v502, 0
      %v615 = vsel %vm426, %v503, 0
      %v618 = vsel %vm426, %v504, 0
      %v621 = vsel %vm426, %v505, 0
      %v624 = vsel %vm426, %v506, 0
      %v627 = vsel %vm426, %v507, 0
      %v630 = vsel %vm426, %v508, 0
      %v633 = vsel %vm426, %v509, 0
      %v636 = vsel %vm426, %v510, 0
      %v639 = vsel %vm426, %v511, 0
      %v642 = vsel %vm426, %v512, 0
      %v645 = vsel %vm426, %v513, 0
      %v648 = vsel %vm426, %v514, 0
      %v651 = vsel %vm426, %v515, 0
      %653 = vmatprep.subr.mxu0 0.0
      %654 = vmatpush1.xpose.msra.mxu0 %v606
      %655 = vmatprep.subr.mxu0 0.0
      %656 = vmatpush1.xpose.msra.mxu0 %v609
      %657 = vmatprep.subr.mxu0 0.0
      %658 = vmatpush1.xpose.msra.mxu0 %v612
      %659 = vmatprep.subr.mxu0 0.0
      %660 = vmatpush1.xpose.msra.mxu0 %v615
      %661 = vmatprep.subr.mxu0 0.0
      %662 = vmatpush1.xpose.msra.mxu0 %v618
      %663 = vmatprep.subr.mxu0 0.0
      %664 = vmatpush1.xpose.msra.mxu0 %v621
      %665 = vmatprep.subr.mxu0 0.0
      %666 = vmatpush1.xpose.msra.mxu0 %v624
      %667 = vmatprep.subr.mxu0 0.0
      %668 = vmatpush1.xpose.msra.mxu0 %v627
      %669 = vmatprep.subr.mxu0 0.0
      %670 = vmatpush1.xpose.msra.mxu0 %v630
      %671 = vmatprep.subr.mxu0 0.0
      %672 = vmatpush1.xpose.msra.mxu0 %v633
      %673 = vmatprep.subr.mxu0 0.0
      %674 = vmatpush1.xpose.msra.mxu0 %v636
      %675 = vmatprep.subr.mxu0 0.0
      %676 = vmatpush1.xpose.msra.mxu0 %v639
      %677 = vmatprep.subr.mxu0 0.0
      %678 = vmatpush1.xpose.msra.mxu0 %v642
      %679 = vmatprep.subr.mxu0 0.0
      %680 = vmatpush1.xpose.msra.mxu0 %v645
      %681 = vmatprep.subr.mxu0 0.0
      %682 = vmatpush1.xpose.msra.mxu0 %v648
      %683 = vmatprep.subr.mxu0 0.0
      %684 = vmatpush1.xpose.msra.mxu0 %v651
      %685 = vmatprep.subr.mxu0 0.0
      %686 = vmatpush1.xpose.msra.mxu0 0.0
      %687 = vmatprep.subr.mxu0 0.0
      %688 = vmatpush1.xpose.msra.mxu0 0.0
      %689 = vmatprep.subr.mxu0 0.0
      %690 = vmatpush1.xpose.msra.mxu0 0.0
      %691 = vmatprep.subr.mxu0 0.0
      %692 = vmatpush1.xpose.msra.mxu0 0.0
      %693 = vmatprep.subr.mxu0 0.0
      %694 = vmatpush1.xpose.msra.mxu0 0.0
      %695 = vmatprep.subr.mxu0 0.0
      %696 = vmatpush1.xpose.msra.mxu0 0.0
      %697 = vmatprep.subr.mxu0 0.0
      %698 = vmatpush1.xpose.msra.mxu0 0.0
      %699 = vmatprep.subr.mxu0 0.0
      %700 = vmatpush1.xpose.msra.mxu0 0.0
      %701 = vmatprep.subr.mxu0 0.0
      %702 = vmatpush1.xpose.msra.mxu0 0.0
      %703 = vmatprep.subr.mxu0 0.0
      %704 = vmatpush1.xpose.msra.mxu0 0.0
      %705 = vmatprep.subr.mxu0 0.0
      %706 = vmatpush1.xpose.msra.mxu0 0.0
      %707 = vmatprep.subr.mxu0 0.0
      %708 = vmatpush1.xpose.msra.mxu0 0.0
      %709 = vmatprep.subr.mxu0 0.0
      %710 = vmatpush1.xpose.msra.mxu0 0.0
      %711 = vmatprep.subr.mxu0 0.0
      %712 = vmatpush1.xpose.msra.mxu0 0.0
      %713 = vmatprep.subr.mxu0 0.0
      %714 = vmatpush1.xpose.msra.mxu0 0.0
      %715 = vmatprep.subr.mxu0 0.0
      %716 = vmatpush1.xpose.msra.mxu0 0.0
      %717 = vmatprep.mubr.f32.mxu0 0.0
      %718 = vmatmul.mubr.f32.gmra.mrb[0].mxu0 %v603
      %v719 = vpop.f32.mrb[0].mxu0
      %v720 = vadd.f32 %v600, %v719
      %v721 = vpop.f32.mrb[0].mxu0
      %722 = vdwg.mxu0
      %723 = vst [vmem:[%s413] sm:$0xff] %v720
      %p724 = scmp.lt.s32.totalorder %s25, 1
      %s725 = scalar_select %p724, %s25, 1
      %p726 = scmp.lt.s32.totalorder %s28, 0
      %s727 = scalar_select %p726, %s28, 0
      %p728 = scmp.lt.s32.totalorder %s26, 0
      %s729 = scalar_select %p728, %s26, 0
      %p730 = scmp.lt.s32.totalorder %s27, 0
      %s731 = scalar_select %p730, %s27, 0
      %s732 = sadd.s32 %s731, %s729
      %s733 = sadd.s32 %s732, %s727
      %s734 = sadd.s32 %s733, %s725
      %s735 = smul.addr %s734, 8
      %s736 = scalar_lea.vmem %s6, %s735
      // Predicated region
      $region45: #{biaffine_forward.1} parent=43 // pred_check
        %p737 = pneg %p229
      $region46: #{biaffine_forward.1} parent=43 // pred_check_branch
        %739 = sbr.rel (%p737) target = $region48
      $region47: #{biaffine_forward.1} parent=43 // pred_region
        _
      $region48: #{biaffine_forward.1} parent=43 // pred_fallthru
        _
    $region44: #{biaffine_forward.1} parent=5 // pred_fallthru
      _
    %p740 = scmp.le.s32.totalorder 2, %s14
    // Predicated region
    $region49: #{biaffine_forward.1} parent=5 // pred_check
      %p741 = pneg %p740
    $region50: #{biaffine_forward.1} parent=5 // pred_check_branch
      %743 = sbr.rel (%p741) target = $region52
    $region51: #{biaffine_forward.1} parent=5 // pred_region
      %s744 = ssub.s32 %s14, 2
      // Predicated region
      $region53: #{biaffine_forward.1} parent=51 // pred_check
        %p745 = pneg %p235
      $region54: #{biaffine_forward.1} parent=51 // pred_check_branch
        %747 = sbr.rel (%p745) target = $region56
      $region55: #{biaffine_forward.1} parent=51 // pred_region
        %p748 = scmp.lt.s32.totalorder %s29, 1
        %s749 = scalar_select %p748, %s29, 1
        %p750 = scmp.lt.s32.totalorder %s32, 0
        %s751 = scalar_select %p750, %s32, 0
        %p752 = scmp.lt.s32.totalorder %s30, 0
        %s753 = scalar_select %p752, %s30, 0
        %p754 = scmp.lt.s32.totalorder %s31, 0
        %s755 = scalar_select %p754, %s31, 0
        %s756 = sadd.s32 %s755, %s753
        %s757 = sadd.s32 %s756, %s751
        %s758 = sadd.s32 %s757, %s749
        %s759 = smul.addr %s758, 8
        %s760 = scalar_lea.vmem %s6, %s759
      $region56: #{biaffine_forward.1} parent=51 // pred_fallthru
        _
    $region52: #{biaffine_forward.1} parent=5 // pred_fallthru
      _
  $region6: #{biaffine_forward.1} parent=0 // loop_footer
    %s18 = sadd.s32 1, %s14
  $region7: #{biaffine_forward.1} parent=0 // loop_footer_branch
    %13 = sbr.rel target = $region3
  $region8: #{biaffine_forward.1} parent=0 // loop_exit
    _

</llo_original>
